<compile_context>
chip_gen: v7x
topology: tpu7x:2x2x1
jax: 0.10.0
libtpu: 0.0.40
codegen_flags: <defaults>
</compile_context>

<pallas_src>
import jax
import jax.numpy as jnp
from jax import lax
from jax.experimental import pallas as pl
from jax.experimental.pallas import tpu as pltpu


def _conv_stats_kernel(p_ref, w_ref, out_ref, sum_ref, sumsq_ref):
    """One grid step = one lane-dense tile of M = N*H_out*W_out output pixels.

    p_ref    : (K, tm)         bf16  im2col patches tile
    w_ref    : (C_out, K)      bf16  weights (same block every step -> resident)
    out_ref  : (C_out, tm)     bf16  conv output tile (lane dense)
    sum_ref  : (1, C_out, 128) f32   per-tile partial channel sums (lane-bcast)
    sumsq_ref: (1, C_out, 128) f32   per-tile partial channel sums of squares
    """
    acc = jnp.dot(w_ref[...], p_ref[...],
                  preferred_element_type=jnp.float32)        # (C_out, tm) f32
    out_ref[...] = acc.astype(out_ref.dtype)

    s = jnp.sum(acc, axis=1, keepdims=True)                  # (C_out, 1) XLU reduce
    ss = jnp.sum(acc * acc, axis=1, keepdims=True)
    sum_ref[0] = jnp.broadcast_to(s, sum_ref.shape[1:])
    sumsq_ref[0] = jnp.broadcast_to(ss, sumsq_ref.shape[1:])


def _bn_celu_kernel(x_ref, scale_ref, shift_ref, out_ref):
    """Fused BatchNorm affine + CELU(alpha=1) on a (C_out, tm) lane-dense tile."""
    x = x_ref[...].astype(jnp.float32)                       # (C_out, tm)
    y = x * scale_ref[...] + shift_ref[...]                  # (C_out,1) lane-bcast
    # CELU(alpha=1): max(0,x) + min(0, exp(x) - 1)   (exp -> EUP slot, ~free)
    out_ref[...] = jnp.where(y > 0, y, jnp.exp(y) - 1.0).astype(out_ref.dtype)


def conv_block_forward(x_nchw, w_oihw, gamma, beta, *, stride, padding,
                       eps=1e-5, tm=256):
    N, C_in, H, W = x_nchw.shape
    C_out, _, KH, KW = w_oihw.shape
    H_out = (H - KH + 2 * padding) // stride + 1
    W_out = (W - KW + 2 * padding) // stride + 1
    K = C_in * KH * KW
    M = N * H_out * W_out

    # ---------------- wrapper glue: zero-pad + im2col (handles stride) --------
    x_pad = jnp.pad(x_nchw, ((0, 0), (0, 0),
                             (padding, padding), (padding, padding)))
    taps = []
    for kh in range(KH):
        for kw in range(KW):
            taps.append(x_pad[:, :,
                              kh: kh + (H_out - 1) * stride + 1: stride,
                              kw: kw + (W_out - 1) * stride + 1: stride])
    # (N,C_in,KH*KW,H_out,W_out) -> (C_in,KH*KW,N,H_out,W_out) -> (K, M)
    patches = jnp.transpose(jnp.stack(taps, axis=2), (1, 2, 0, 3, 4))
    patches = patches.reshape(K, M)

    num_tiles = pl.cdiv(M, tm)
    M_pad = num_tiles * tm
    if M_pad != M:
        # Zero columns contribute 0 to sum/sumsq, so batch stats stay exact.
        patches = jnp.pad(patches, ((0, 0), (0, M_pad - M)))

    patches = patches.astype(jnp.bfloat16)                   # halve HBM reads
    w_mat = w_oihw.reshape(C_out, K).astype(jnp.bfloat16)    # native bf16 MXU path

    # ---------------- kernel 1: conv matmul + per-tile BN partial stats -------
    conv_fn = pl.pallas_call(
        _conv_stats_kernel,
        grid=(num_tiles,),
        in_specs=[
            pl.BlockSpec((K, tm), lambda t: (0, t)),
            pl.BlockSpec((C_out, K), lambda t: (0, 0)),
        ],
        out_specs=(
            pl.BlockSpec((C_out, tm), lambda t: (0, t)),
            pl.BlockSpec((1, C_out, 128), lambda t: (t, 0, 0)),
            pl.BlockSpec((1, C_out, 128), lambda t: (t, 0, 0)),
        ),
        out_shape=(
            jax.ShapeDtypeStruct((C_out, M_pad), jnp.bfloat16),
            jax.ShapeDtypeStruct((num_tiles, C_out, 128), jnp.float32),
            jax.ShapeDtypeStruct((num_tiles, C_out, 128), jnp.float32),
        ),
        compiler_params=pltpu.CompilerParams(
            dimension_semantics=("parallel",),
            vmem_limit_bytes=32 * 1024 * 1024),
    )
    conv_out, psum, psumsq = conv_fn(patches, w_mat)

    # ------- tiny per-channel glue: training-mode batch statistics ------------
    # (E[x^2]-E[x]^2 in f32; clamped at 0. For very large M, a two-pass /
    #  Welford scheme would be preferable numerically.)
    csum = jnp.sum(psum[:, :, 0], axis=0)                    # (C_out,)
    csumsq = jnp.sum(psumsq[:, :, 0], axis=0)
    count = float(M)
    mean = csum / count
    var = jnp.maximum(csumsq / count - mean * mean, 0.0)     # biased var (train)
    scale = (gamma / jnp.sqrt(var + eps)).astype(jnp.float32)
    shift = (beta - mean * scale).astype(jnp.float32)

    # ---------------- kernel 2: fused BatchNorm affine + CELU -----------------
    bn_fn = pl.pallas_call(
        _bn_celu_kernel,
        grid=(num_tiles,),
        in_specs=[
            pl.BlockSpec((C_out, tm), lambda t: (0, t)),
            pl.BlockSpec((C_out, 1), lambda t: (0, 0)),
            pl.BlockSpec((C_out, 1), lambda t: (0, 0)),
        ],
        out_specs=pl.BlockSpec((C_out, tm), lambda t: (0, t)),
        out_shape=jax.ShapeDtypeStruct((C_out, M_pad), jnp.float32),
        compiler_params=pltpu.CompilerParams(
            dimension_semantics=("parallel",),
            vmem_limit_bytes=32 * 1024 * 1024),
    )
    y2d = bn_fn(conv_out, scale[:, None], shift[:, None])

    # (C_out, M) -> (N, C_out, H_out, W_out): leading-axis swap only (cheap glue)
    y = y2d[:, :M].reshape(C_out, N, H_out, W_out)
    return jnp.transpose(y, (1, 0, 2, 3))


def _reference(x_nchw, w_oihw, gamma, beta, *, stride, padding, eps=1e-5):
    conv = lax.conv_general_dilated(
        x_nchw, w_oihw, (stride, stride),
        [(padding, padding), (padding, padding)],
        dimension_numbers=("NCHW", "OIHW", "NCHW"))
    mean = conv.mean(axis=(0, 2, 3), keepdims=True)
    var = conv.var(axis=(0, 2, 3), keepdims=True)
    y = ((conv - mean) / jnp.sqrt(var + eps)
         * gamma[None, :, None, None] + beta[None, :, None, None])
    return jnp.where(y > 0, y, jnp.exp(y) - 1.0)


if __name__ == "__main__":
    # Module hyperparameters (small, consistent with ConvBlock's __init__).
    N, C_in, C_out = 2, 4, 8
    KSIZE, STRIDE, PAD, INPUT = 3, 1, 1, 16

    key = jax.random.PRNGKey(0)
    kx, kw = jax.random.split(key)
    x = jax.random.normal(kx, (N, C_in, INPUT, INPUT), jnp.float32)
    # Deterministic kaiming-style init for the conv weight (bias=False).
    fan_in = C_in * KSIZE * KSIZE
    w = jax.random.normal(kw, (C_out, C_in, KSIZE, KSIZE), jnp.float32) / jnp.sqrt(fan_in)
    # BatchNorm2d default init: gamma=1, beta=0.
    gamma = jnp.ones((C_out,), jnp.float32)
    beta = jnp.zeros((C_out,), jnp.float32)

    out = conv_block_forward(x, w, gamma, beta, stride=STRIDE, padding=PAD)
    out = jax.block_until_ready(out)
    ref = _reference(x, w, gamma, beta, stride=STRIDE, padding=PAD)
    assert out.shape == ref.shape, (out.shape, ref.shape)
    # bf16 inputs + bf16 conv intermediate -> relaxed tolerance vs f32 reference.
    assert jnp.allclose(out, ref, atol=5e-2, rtol=5e-2), \
        float(jnp.max(jnp.abs(out - ref)))

    # stride-2 / no-padding case exercises the ragged-M (zero-padded tile) path.
    out2 = conv_block_forward(x, w, gamma, beta, stride=2, padding=0)
    out2 = jax.block_until_ready(out2)
    ref2 = _reference(x, w, gamma, beta, stride=2, padding=0)
    assert out2.shape == ref2.shape, (out2.shape, ref2.shape)
    assert jnp.allclose(out2, ref2, atol=5e-2, rtol=5e-2), \
        float(jnp.max(jnp.abs(out2 - ref2)))

    print("KERNEL_OK")
</pallas_src>

<mosaic_0001>
module attributes {stable_mosaic.version = 11 : i64} {
  func.func @_conv_stats_kernel(%arg0: i32, %arg1: memref<36x256xbf16, #tpu.memory_space<vmem>>, %arg2: memref<8x36xbf16, #tpu.memory_space<vmem>>, %arg3: memref<8x256xbf16, #tpu.memory_space<vmem>>, %arg4: memref<1x8x128xf32, #tpu.memory_space<vmem>>, %arg5: memref<1x8x128xf32, #tpu.memory_space<vmem>>) attributes {dimension_semantics = [#tpu.dimension_semantics<parallel>], iteration_bounds = array<i64: 2>, scalar_prefetch = 0 : i64, scratch_operands = 0 : i64, tpu.core_type = #tpu.core_type<tc>, window_params = [{transform_indices = @transform_0, window_bounds = array<i64: 36, 256>}, {pipeline_mode = #tpu.pipeline_mode<synchronous>, transform_indices = @transform_1, window_bounds = array<i64: 8, 36>}, {transform_indices = @transform_2, window_bounds = array<i64: 8, 256>}, {transform_indices = @transform_3, window_bounds = array<i64: 1, 8, 128>}, {transform_indices = @transform_4, window_bounds = array<i64: 1, 8, 128>}]} {
    %c0 = arith.constant 0 : index
    %c0_0 = arith.constant 0 : index
    %0 = vector.load %arg2[%c0, %c0_0] : memref<8x36xbf16, #tpu.memory_space<vmem>>, vector<8x36xbf16>
    %c0_1 = arith.constant 0 : index
    %c0_2 = arith.constant 0 : index
    %1 = vector.load %arg1[%c0_1, %c0_2] : memref<36x256xbf16, #tpu.memory_space<vmem>>, vector<36x256xbf16>
    %cst = arith.constant dense<0.000000e+00> : vector<8x256xf32>
    %2 = tpu.matmul %0, %1, %cst {dimension_numbers = #tpu.dot_dimension_numbers<[1], [0], [0], [1], [0, 0, 1, 1], [], []>} : vector<8x36xbf16>, vector<36x256xbf16>, vector<8x256xf32> -> vector<8x256xf32>
    %3 = arith.truncf %2 : vector<8x256xf32> to vector<8x256xbf16>
    %c0_3 = arith.constant 0 : index
    %c0_4 = arith.constant 0 : index
    %4 = vector.load %arg3[%c0_3, %c0_4] : memref<8x256xbf16, #tpu.memory_space<vmem>>, vector<8x256xbf16>
    tpu.vector_store %arg3[%c0_3, %c0_4], %3 {strides = array<i32>} : memref<8x256xbf16, #tpu.memory_space<vmem>>, vector<8x256xbf16>,
    %cst_5 = arith.constant dense<0.000000e+00> : vector<8xf32>
    %5 = vector.multi_reduction <add>, %2, %cst_5 [1] : vector<8x256xf32> to vector<8xf32>
    %6 = vector.shape_cast %5 : vector<8xf32> to vector<8x1xf32>
    %7 = arith.mulf %2, %2 : vector<8x256xf32>
    %cst_6 = arith.constant dense<0.000000e+00> : vector<8xf32>
    %8 = vector.multi_reduction <add>, %7, %cst_6 [1] : vector<8x256xf32> to vector<8xf32>
    %9 = vector.shape_cast %8 : vector<8xf32> to vector<8x1xf32>
    %10 = vector.shape_cast %6 : vector<8x1xf32> to vector<8x1xf32>
    %11 = vector.broadcast %10 : vector<8x1xf32> to vector<8x128xf32>
    %c0_7 = arith.constant 0 : index
    %c0_8 = arith.constant 0 : index
    %c0_9 = arith.constant 0 : index
    %12 = vector.load %arg4[%c0_7, %c0_8, %c0_9] : memref<1x8x128xf32, #tpu.memory_space<vmem>>, vector<1x8x128xf32>
    %13 = vector.shape_cast %12 : vector<1x8x128xf32> to vector<8x128xf32>
    %14 = vector.shape_cast %11 : vector<8x128xf32> to vector<1x8x128xf32>
    tpu.vector_store %arg4[%c0_7, %c0_8, %c0_9], %14 {strides = array<i32>} : memref<1x8x128xf32, #tpu.memory_space<vmem>>, vector<1x8x128xf32>,
    %15 = vector.shape_cast %9 : vector<8x1xf32> to vector<8x1xf32>
    %16 = vector.broadcast %15 : vector<8x1xf32> to vector<8x128xf32>
    %c0_10 = arith.constant 0 : index
    %c0_11 = arith.constant 0 : index
    %c0_12 = arith.constant 0 : index
    %17 = vector.load %arg5[%c0_10, %c0_11, %c0_12] : memref<1x8x128xf32, #tpu.memory_space<vmem>>, vector<1x8x128xf32>
    %18 = vector.shape_cast %17 : vector<1x8x128xf32> to vector<8x128xf32>
    %19 = vector.shape_cast %16 : vector<8x128xf32> to vector<1x8x128xf32>
    tpu.vector_store %arg5[%c0_10, %c0_11, %c0_12], %19 {strides = array<i32>} : memref<1x8x128xf32, #tpu.memory_space<vmem>>, vector<1x8x128xf32>,
    return
  }
  func.func @transform_0(%arg0: i32) -> (i32, i32) {
    %c0_i32 = arith.constant 0 : i32
    %c0_i32_0 = arith.constant 0 : i32
    return %c0_i32, %arg0 : i32, i32
  }
  func.func @transform_1(%arg0: i32) -> (i32, i32) {
    %c0_i32 = arith.constant 0 : i32
    %c0_i32_0 = arith.constant 0 : i32
    %c0_i32_1 = arith.constant 0 : i32
    return %c0_i32, %c0_i32_0 : i32, i32
  }
  func.func @transform_2(%arg0: i32) -> (i32, i32) {
    %c0_i32 = arith.constant 0 : i32
    %c0_i32_0 = arith.constant 0 : i32
    return %c0_i32, %arg0 : i32, i32
  }
  func.func @transform_3(%arg0: i32) -> (i32, i32, i32) {
    %c0_i32 = arith.constant 0 : i32
    %c0_i32_0 = arith.constant 0 : i32
    %c0_i32_1 = arith.constant 0 : i32
    return %arg0, %c0_i32, %c0_i32_0 : i32, i32, i32
  }
  func.func @transform_4(%arg0: i32) -> (i32, i32, i32) {
    %c0_i32 = arith.constant 0 : i32
    %c0_i32_0 = arith.constant 0 : i32
    %c0_i32_1 = arith.constant 0 : i32
    return %arg0, %c0_i32, %c0_i32_0 : i32, i32, i32
  }
}

</mosaic_0001>

<llo_original>
// kernel: tpu_custom_call.1
$region0: #{tpu_custom_call.1}
  #allocation0 [shape = 'u32[]', space=smem, size = 0x4, offset = 0x4, fixed_abs, tag = 'smem constant byte address 0x4 - core index']
  #allocation1 [shape = 'u32[144,128]{1,0:T(1,128)}', space=vmem, size = 0x12000, scoped, tag = 'internal scratch']
  %s0 = inlined_call_operand.hbm [shape: bf16[36,512], index: 0, kind: input, shape index: {}]
  %s1 = inlined_call_operand.hbm [shape: bf16[8,36], index: 1, kind: input, shape index: {}]
  %s2 = inlined_call_operand.hbm [shape: bf16[8,512], index: 2, kind: output, shape index: {0}]
  %s3 = inlined_call_operand.hbm [shape: f32[2,8,128], index: 3, kind: output, shape index: {1}]
  %s4 = inlined_call_operand.hbm [shape: f32[2,8,128], index: 4, kind: output, shape index: {2}]
  %5 = xla_tuple %s2, %s3, %s4
  %s6 = sld [smem:[#allocation0]]
  $region65: #{tpu_custom_call.1} parent=0
    _
  %s8 = ssub.s32 1, %s6
  %s9 = scalar_select 0, %s8, %s6
  $region1: #{tpu_custom_call.1} parent=0
    #allocation2 [shape = 'u8[40960]{0}', space=vmem, size = 0xa000, scoped, tag = 'input window, operand 0']
    #allocation3 [shape = 's32[2]{0}', space=sflag, size = 0x8, scoped, tag = 'scoped memory for tpu_custom_call.1']
    #allocation4 [shape = 's32[2]{0}', space=sflag, size = 0x8, scoped, tag = 'scoped memory for tpu_custom_call.1']
    #allocation5 [shape = 'u8[2048]{0}', space=vmem, size = 0x800, scoped, tag = 'input window, operand 1, single buffered']
    #allocation6 [shape = 's32[1]{0}', space=sflag, size = 0x4, scoped, tag = 'scoped memory for tpu_custom_call.1']
    #allocation7 [shape = 'u8[8192]{0}', space=vmem, size = 0x2000, scoped, tag = 'output window, operand 0']
    #allocation8 [shape = 'u8[8192]{0}', space=vmem, size = 0x2000, scoped, tag = 'output window, operand 1']
    #allocation9 [shape = 's32[2]{0}', space=sflag, size = 0x8, scoped, tag = 'scoped memory for tpu_custom_call.1']
    #allocation10 [shape = 'u8[8192]{0}', space=vmem, size = 0x2000, scoped, tag = 'output window, operand 2']
    %10 = vsyncpa [#allocation3], 0
    %s11 = scalar_lea.sflag [#allocation3], 1
    %12 = vsyncpa %s11, 0
    %13 = vsyncpa [#allocation6], 0
    %14 = vsyncpa [#allocation4], 0
    %s15 = scalar_lea.sflag [#allocation4], 1
    %16 = vsyncpa %s15, 0
    %17 = vsyncpa [#allocation9], 0
    %s18 = scalar_lea.sflag [#allocation9], 1
    %19 = vsyncpa %s18, 0
    loop: start=0, step=1, limit=4
    $region2: #{tpu_custom_call.1} parent=1 // loop_pre_header
      _
    $region3: #{tpu_custom_call.1} parent=1 // loop_header
      %s21 = sphi 0, %s25
      %p22 = scmp.ge.s32.totalorder %s21, 4
      %s31 = sphi 0, %s33
      %s34 = sphi 0, %s31
      %s35 = sphi 0, %s34
      %s51 = sphi 0, %s35
      %s55 = sphi 0, %s55
      %s57 = sphi 0, %s55
      %s58 = sphi 0, %s57
      %s72 = sphi 0, %s58
      %s78 = sphi 0, %s80
      %s81 = sphi 0, %s78
      %s82 = sphi 0, %s81
      %s98 = sphi 0, %s82
      %s104 = sphi 0, %s106
      %s107 = sphi 0, %s104
      %s108 = sphi 0, %s107
      %s124 = sphi 0, %s108
      %s130 = sphi 0, %s132
      %s133 = sphi 0, %s130
      %s134 = sphi 0, %s133
      %s150 = sphi 0, %s134
    $region4: #{tpu_custom_call.1} parent=1 // loop_header_branch
      %24 = sbr.rel (%p22) target = $region8
    $region5: #{tpu_custom_call.1} parent=1 // loop_body
      %s26 = ssub.s32 %s21, 1
      %s27 = ssub.s32 %s21, 2
      %s28 = sadd.s32 %s21, 1
      %s29 = ssub.s32 %s21, %s28
      %p30 = scmp.eq.s32.totalorder %s29, 0
      %s32 = sadd.s32 %s31, 1
      %s33 = scalar_select %p30, %s31, %s32
      %p36 = pneg %p30
      %p37 = scmp.eq.s32.totalorder %s21, 1
      %p38 = por %p36, %p37
      %p39 = scmp.ne.s32.totalorder %s31, %s34
      %p40 = scmp.eq.s32.totalorder %s21, 0
      %p41 = por %p39, %p40
      %p42 = scmp.ne.s32.totalorder %s31, %s34
      %p43 = scmp.eq.s32.totalorder %s26, 1
      %p44 = por %p42, %p43
      %p45 = scmp.ne.s32.totalorder %s34, %s35
      %p46 = scmp.eq.s32.totalorder %s26, 0
      %p47 = por %p45, %p46
      %p48 = scmp.ne.s32.totalorder %s34, %s35
      %p49 = scmp.eq.s32.totalorder %s27, 1
      %p50 = por %p48, %p49
      %p52 = scmp.ne.s32.totalorder %s35, %s51
      %p53 = scmp.eq.s32.totalorder %s27, 0
      %p54 = por %p52, %p53
      %s56 = sadd.s32 %s55, 1
      %p59 = scmp.eq.s32.totalorder %s21, 1
      %p60 = scmp.ne.s32.totalorder %s55, %s57
      %p61 = scmp.eq.s32.totalorder %s21, 0
      %p62 = por %p60, %p61
      %p63 = scmp.ne.s32.totalorder %s55, %s57
      %p64 = scmp.eq.s32.totalorder %s26, 1
      %p65 = por %p63, %p64
      %p66 = scmp.ne.s32.totalorder %s57, %s58
      %p67 = scmp.eq.s32.totalorder %s26, 0
      %p68 = por %p66, %p67
      %p69 = scmp.ne.s32.totalorder %s57, %s58
      %p70 = scmp.eq.s32.totalorder %s27, 1
      %p71 = por %p69, %p70
      %p73 = scmp.ne.s32.totalorder %s58, %s72
      %p74 = scmp.eq.s32.totalorder %s27, 0
      %p75 = por %p73, %p74
      %s76 = ssub.s32 %s21, %s28
      %p77 = scmp.eq.s32.totalorder %s76, 0
      %s79 = sadd.s32 %s78, 1
      %s80 = scalar_select %p77, %s78, %s79
      %p83 = pneg %p77
      %p84 = scmp.eq.s32.totalorder %s21, 1
      %p85 = por %p83, %p84
      %p86 = scmp.ne.s32.totalorder %s78, %s81
      %p87 = scmp.eq.s32.totalorder %s21, 0
      %p88 = por %p86, %p87
      %p89 = scmp.ne.s32.totalorder %s78, %s81
      %p90 = scmp.eq.s32.totalorder %s26, 1
      %p91 = por %p89, %p90
      %p92 = scmp.ne.s32.totalorder %s81, %s82
      %p93 = scmp.eq.s32.totalorder %s26, 0
      %p94 = por %p92, %p93
      %p95 = scmp.ne.s32.totalorder %s81, %s82
      %p96 = scmp.eq.s32.totalorder %s27, 1
      %p97 = por %p95, %p96
      %p99 = scmp.ne.s32.totalorder %s82, %s98
      %p100 = scmp.eq.s32.totalorder %s27, 0
      %p101 = por %p99, %p100
      %s102 = ssub.s32 %s21, %s28
      %p103 = scmp.eq.s32.totalorder %s102, 0
      %s105 = sadd.s32 %s104, 1
      %s106 = scalar_select %p103, %s104, %s105
      %p109 = pneg %p103
      %p110 = scmp.eq.s32.totalorder %s21, 1
      %p111 = por %p109, %p110
      %p112 = scmp.ne.s32.totalorder %s104, %s107
      %p113 = scmp.eq.s32.totalorder %s21, 0
      %p114 = por %p112, %p113
      %p115 = scmp.ne.s32.totalorder %s104, %s107
      %p116 = scmp.eq.s32.totalorder %s26, 1
      %p117 = por %p115, %p116
      %p118 = scmp.ne.s32.totalorder %s107, %s108
      %p119 = scmp.eq.s32.totalorder %s26, 0
      %p120 = por %p118, %p119
      %p121 = scmp.ne.s32.totalorder %s107, %s108
      %p122 = scmp.eq.s32.totalorder %s27, 1
      %p123 = por %p121, %p122
      %p125 = scmp.ne.s32.totalorder %s108, %s124
      %p126 = scmp.eq.s32.totalorder %s27, 0
      %p127 = por %p125, %p126
      %s128 = ssub.s32 %s21, %s28
      %p129 = scmp.eq.s32.totalorder %s128, 0
      %s131 = sadd.s32 %s130, 1
      %s132 = scalar_select %p129, %s130, %s131
      %p135 = pneg %p129
      %p136 = scmp.eq.s32.totalorder %s21, 1
      %p137 = por %p135, %p136
      %p138 = scmp.ne.s32.totalorder %s130, %s133
      %p139 = scmp.eq.s32.totalorder %s21, 0
      %p140 = por %p138, %p139
      %p141 = scmp.ne.s32.totalorder %s130, %s133
      %p142 = scmp.eq.s32.totalorder %s26, 1
      %p143 = por %p141, %p142
      %p144 = scmp.ne.s32.totalorder %s133, %s134
      %p145 = scmp.eq.s32.totalorder %s26, 0
      %p146 = por %p144, %p145
      %p147 = scmp.ne.s32.totalorder %s133, %s134
      %p148 = scmp.eq.s32.totalorder %s27, 1
      %p149 = por %p147, %p148
      %p151 = scmp.ne.s32.totalorder %s134, %s150
      %p152 = scmp.eq.s32.totalorder %s27, 0
      %p153 = por %p151, %p152
      %p154 = scmp.le.s32.totalorder 1, %s21
      %p155 = scmp.lt.s32.totalorder %s21, 3
      %p156 = pnand %p154, %p155
      %p157 = pneg %p156
      // Predicated region
      $region9: #{tpu_custom_call.1} parent=5 // pred_check
        _
      $region10: #{tpu_custom_call.1} parent=5 // pred_check_branch
        %159 = sbr.rel (%p156) target = $region12
      $region11: #{tpu_custom_call.1} parent=5 // pred_region
        %s160 = ssub.s32 %s21, 1
        // Predicated region
        $region13: #{tpu_custom_call.1} parent=11 // pred_check
          %p161 = pneg %p68
        $region14: #{tpu_custom_call.1} parent=11 // pred_check_branch
          %163 = sbr.rel (%p161) target = $region16
        $region15: #{tpu_custom_call.1} parent=11 // pred_region
          %s165 = ssub.s32 64, 64
          %166 = vsyncadd [#allocation6], %s165
          %s168 = sshll.u32 [#allocation5], 4
          %s169 = int_to_ptr.vmem [resolvable:$true] %s168
          %171 = dma.hbm_to_vmem [thread:$0]  %s1, 64, %s169, [#allocation6]
        $region16: #{tpu_custom_call.1} parent=11 // pred_fallthru
          _
      $region12: #{tpu_custom_call.1} parent=5 // pred_fallthru
        _
      %p172 = scmp.lt.s32.totalorder %s21, 2
      // Predicated region
      $region17: #{tpu_custom_call.1} parent=5 // pred_check
        %p173 = pneg %p172
      $region18: #{tpu_custom_call.1} parent=5 // pred_check_branch
        %175 = sbr.rel (%p173) target = $region20
      $region19: #{tpu_custom_call.1} parent=5 // pred_region
        // Predicated region
        $region21: #{tpu_custom_call.1} parent=19 // pred_check
          %p176 = pneg %p41
        $region22: #{tpu_custom_call.1} parent=19 // pred_check_branch
          %178 = sbr.rel (%p176) target = $region24
        $region23: #{tpu_custom_call.1} parent=19 // pred_region
          %s179 = sand.u32 %s31, 1
          %s180 = scalar_lea.sflag [#allocation3], %s179
          %s181 = sand.u32 %s31, 1
          %s182 = smul.addr %s181, 40
          %s183 = scalar_lea.vmem [#allocation2], %s182
          %s184 = smul.u32 2, %s21
          %s186 = ssub.s32 640, 640
          %187 = vsyncadd %s180, %s186
          %s188 = smul.addr %s184, 64
          %s189 = scalar_lea.hbm %s0, %s188
          %s190 = sshll.u32 %s183, 4
          %s191 = int_to_ptr.vmem [resolvable:$true] %s190
          %196 = dma.hbm_to_vmem [thread:$0]  %s189, 640, %s191, %s180, 256, 128, 8
        $region24: #{tpu_custom_call.1} parent=19 // pred_fallthru
          _
      $region20: #{tpu_custom_call.1} parent=5 // pred_fallthru
        _
      %p197 = scmp.le.s32.totalorder 1, %s21
      %p198 = scmp.lt.s32.totalorder %s21, 3
      %p199 = pnand %p197, %p198
      %p200 = pneg %p199
      // Predicated region
      $region25: #{tpu_custom_call.1} parent=5 // pred_check
        _
      $region26: #{tpu_custom_call.1} parent=5 // pred_check_branch
        %202 = sbr.rel (%p199) target = $region28
      $region27: #{tpu_custom_call.1} parent=5 // pred_region
        %s203 = ssub.s32 %s21, 1
        %s204 = sand.u32 %s34, 1
        %s205 = scalar_lea.sflag [#allocation3], %s204
        %s206 = sand.u32 %s34, 1
        %s207 = smul.addr %s206, 40
        %s208 = scalar_lea.vmem [#allocation2], %s207
        // Predicated region
        $region29: #{tpu_custom_call.1} parent=27 // pred_check
          %p209 = pneg %p47
        $region30: #{tpu_custom_call.1} parent=27 // pred_check_branch
          %211 = sbr.rel (%p209) target = $region32
        $region31: #{tpu_custom_call.1} parent=27 // pred_region
          %212 = dma.done %s205, 640
        $region32: #{tpu_custom_call.1} parent=27 // pred_fallthru
          _
        // Predicated region
        $region33: #{tpu_custom_call.1} parent=27 // pred_check
          %p213 = pneg %p68
        $region34: #{tpu_custom_call.1} parent=27 // pred_check_branch
          %215 = sbr.rel (%p213) target = $region36
        $region35: #{tpu_custom_call.1} parent=27 // pred_region
          %216 = dma.done [#allocation6], 64
        $region36: #{tpu_custom_call.1} parent=27 // pred_fallthru
          _
        %s217 = sand.u32 %s34, 1
        %s218 = scalar_lea.sflag [#allocation3], %s217
        %s219 = sand.u32 %s34, 1
        %s220 = smul.addr %s219, 40
        %s221 = scalar_lea.vmem [#allocation2], %s220
        %p222 = pneg %p47
        %p223 = pneg %p44
        %p224 = pneg %p68
        %p225 = pneg %p65
        %p226 = pneg %p94
        %p227 = pneg %p91
        %s228 = sand.u32 %s81, 1
        %s229 = scalar_lea.sflag [#allocation4], %s228
        %s230 = sand.u32 %s81, 1
        %s231 = smul.addr %s230, 8
        %s232 = scalar_lea.vmem [#allocation7], %s231
        %p233 = pneg %p120
        %p234 = pneg %p117
        %s235 = sand.u32 %s26, 1
        %s236 = scalar_lea.sflag [#allocation9], %s235
        %s237 = sand.u32 %s107, 1
        %s238 = smul.addr %s237, 8
        %s239 = scalar_lea.vmem [#allocation8], %s238
        %p240 = pneg %p146
        %p241 = pneg %p143
        %s242 = sand.u32 %s26, 1
        %s243 = scalar_lea.sflag [#allocation9], %s242
        %s244 = sand.u32 %s133, 1
        %s245 = smul.addr %s244, 8
        %s246 = scalar_lea.vmem [#allocation10], %s245
        %s247 = smul.u32 2, %s26
        %s248 = smul.u32 2, %s26
        %v250 = vld [vmem:[#allocation5] sm:$0xf]
        %v251 = vld [vmem:[%s208] sm:$0xff]
        %v252 = vld [vmem:[%s208 + $0x8] sm:$0xff]
        %v253 = vld [vmem:[%s208 + $0x10] sm:$0xff]
        %v254 = vld [vmem:[%s208 + $0x18] sm:$0xff]
        %v255 = vld [vmem:[%s208 + $0x20] sm:$0x33]
        %v261 = vunpack.c.l.b16 %v251
        %v262 = vunpack.c.h.b16 %v251
        %v263 = vunpack.c.l.b16 %v252
        %v264 = vunpack.c.h.b16 %v252
        %v265 = vunpack.c.l.b16 %v253
        %v266 = vunpack.c.h.b16 %v253
        %v267 = vunpack.c.l.b16 %v254
        %v268 = vunpack.c.h.b16 %v254
        %v269 = vunpack.c.l.b16 %v255
        %v270 = vunpack.c.h.b16 %v255
        %v271 = vpack.c.b16 %v263, %v261
        %v272 = vpack.c.b16 %v264, %v262
        %v273 = vpack.c.b16 %v267, %v265
        %v274 = vpack.c.b16 %v268, %v266
        %v275 = vpack.c.b16 %v269, %v269
        %v276 = vpack.c.b16 %v270, %v270
        %vm281 = vcmask 293888
        %v283 = vsel %vm281, %v250, 0
        %vm285 = vcmask 1041408
        %v287 = vsel %vm285, %v275, 0
        %v290 = vsel %vm285, %v276, 0
        %292 = vmatprep.subr.bf16.mxu0 %v272
        %293 = vmatpush1.bf16.msra.mxu0 %v271
        %294 = vmatprep.subr.bf16.mxu0 %v274
        %295 = vmatpush1.bf16.msra.mxu0 %v273
        %296 = vmatprep.subr.bf16.mxu0 %v290
        %297 = vmatpush1.bf16.msra.mxu0 %v287
        %298 = vmatprep.subr.bf16.mxu0 0
        %299 = vmatpush1.bf16.msra.mxu0 0
        %300 = vmatprep.subr.bf16.mxu0 0
        %301 = vmatpush1.bf16.msra.mxu0 0
        %302 = vmatprep.subr.bf16.mxu0 0
        %303 = vmatpush1.bf16.msra.mxu0 0
        %304 = vmatprep.subr.bf16.mxu0 0
        %305 = vmatpush1.bf16.msra.mxu0 0
        %306 = vmatprep.subr.bf16.mxu0 0
        %307 = vmatpush1.bf16.msra.mxu0 0
        %308 = vmatprep.subr.bf16.mxu0 0
        %309 = vmatpush1.bf16.msra.mxu0 0
        %310 = vmatprep.subr.bf16.mxu0 0
        %311 = vmatpush1.bf16.msra.mxu0 0
        %312 = vmatprep.subr.bf16.mxu0 0
        %313 = vmatpush1.bf16.msra.mxu0 0
        %314 = vmatprep.subr.bf16.mxu0 0
        %315 = vmatpush1.bf16.msra.mxu0 0
        %316 = vmatprep.subr.bf16.mxu0 0
        %317 = vmatpush1.bf16.msra.mxu0 0
        %318 = vmatprep.subr.bf16.mxu0 0
        %319 = vmatpush1.bf16.msra.mxu0 0
        %320 = vmatprep.subr.bf16.mxu0 0
        %321 = vmatpush1.bf16.msra.mxu0 0
        %322 = vmatprep.subr.bf16.mxu0 0
        %323 = vmatpush1.bf16.msra.mxu0 0
        %324 = vmatprep.mubr.bf16.mxu0 0
        %325 = vmatmul.mubr.bf16.gmra.mrb[0].mxu0 %v283
        %v326 = vpop.f32.mrb[0].mxu0
        %v327 = vadd.f32 0.0, %v326
        %v328 = vpop.f32.mrb[0].mxu0
        %v329 = vadd.f32 0.0, %v328
        %v330 = vpop.f32.mrb[0].mxu0
        %v331 = vpop.f32.mrb[0].mxu0
        %332 = vdwg.mxu0
        %v333 = vpack.c.bf16 %v327, %v327
        %v334 = vpack.c.bf16 %v329, %v329
        %v337 = vunpack.c.l.b16 %v333
        %v338 = vunpack.c.l.b16 %v334
        %v339 = vpack.c.b16 %v338, %v337
        %341 = vst [vmem:[%s232] sm:$0xff] %v339
        %v342 = vadd.f32 %v327, %v329
        %343 = vadd.xlane.f32.xlu0 %v342
        %v344 = vpop.xlane.xlu0 %343
        %v345 = vmul.f32 %v327, %v327
        %v346 = vmul.f32 %v329, %v329
        %v347 = vadd.f32 %v345, %v346
        %348 = vadd.xlane.f32.xlu0 %v347
        %v349 = vpop.xlane.xlu0 %348
        %350 = vst [vmem:[%s239] sm:$0xff] %v344
        %351 = vst [vmem:[%s246] sm:$0xff] %v349
        %s352 = sand.u32 %s81, 1
        %s353 = scalar_lea.sflag [#allocation4], %s352
        %s354 = sand.u32 %s81, 1
        %s355 = smul.addr %s354, 8
        %s356 = scalar_lea.vmem [#allocation7], %s355
        %s357 = sand.u32 %s26, 1
        %s358 = scalar_lea.sflag [#allocation9], %s357
        %s359 = sand.u32 %s107, 1
        %s360 = smul.addr %s359, 8
        %s361 = scalar_lea.vmem [#allocation8], %s360
        %s362 = sand.u32 %s26, 1
        %s363 = scalar_lea.sflag [#allocation9], %s362
        %s364 = sand.u32 %s133, 1
        %s365 = smul.addr %s364, 8
        %s366 = scalar_lea.vmem [#allocation10], %s365
        // Predicated region
        $region37: #{tpu_custom_call.1} parent=27 // pred_check
          %p367 = pneg %p91
        $region38: #{tpu_custom_call.1} parent=27 // pred_check_branch
          %369 = sbr.rel (%p367) target = $region40
        $region39: #{tpu_custom_call.1} parent=27 // pred_region
          %s370 = smul.u32 2, %s26
          %s372 = ssub.s32 128, 128
          %373 = vsyncadd %s353, %s372
          %s374 = smul.addr %s370, 64
          %s375 = scalar_lea.hbm %s2, %s374
          %s377 = sshll.u32 %s356, 4
          %s378 = int_to_ptr.vmem [resolvable:$true] %s377
          %380 = dma.vmem_to_hbm [thread:$0]  %s378, 128, %s375, %s353
        $region40: #{tpu_custom_call.1} parent=27 // pred_fallthru
          _
        // Predicated region
        $region41: #{tpu_custom_call.1} parent=27 // pred_check
          %p381 = pneg %p117
        $region42: #{tpu_custom_call.1} parent=27 // pred_check_branch
          %383 = sbr.rel (%p381) target = $region44
        $region43: #{tpu_custom_call.1} parent=27 // pred_region
          %s385 = ssub.s32 128, 128
          %386 = vsyncadd %s358, %s385
          %s387 = smul.addr %s26, 128
          %s388 = scalar_lea.hbm %s3, %s387
          %s390 = sshll.u32 %s361, 4
          %s391 = int_to_ptr.vmem [resolvable:$true] %s390
          %393 = dma.vmem_to_hbm [thread:$0]  %s391, 128, %s388, %s358
        $region44: #{tpu_custom_call.1} parent=27 // pred_fallthru
          _
        // Predicated region
        $region45: #{tpu_custom_call.1} parent=27 // pred_check
          %p394 = pneg %p143
        $region46: #{tpu_custom_call.1} parent=27 // pred_check_branch
          %396 = sbr.rel (%p394) target = $region48
        $region47: #{tpu_custom_call.1} parent=27 // pred_region
          %s398 = ssub.s32 128, 128
          %399 = vsyncadd %s363, %s398
          %s400 = smul.addr %s26, 128
          %s401 = scalar_lea.hbm %s4, %s400
          %s403 = sshll.u32 %s366, 4
          %s404 = int_to_ptr.vmem [resolvable:$true] %s403
          %406 = dma.vmem_to_hbm [thread:$0]  %s404, 128, %s401, %s363
        $region48: #{tpu_custom_call.1} parent=27 // pred_fallthru
          _
      $region28: #{tpu_custom_call.1} parent=5 // pred_fallthru
        _
      %p407 = scmp.le.s32.totalorder 2, %s21
      // Predicated region
      $region49: #{tpu_custom_call.1} parent=5 // pred_check
        %p408 = pneg %p407
      $region50: #{tpu_custom_call.1} parent=5 // pred_check_branch
        %410 = sbr.rel (%p408) target = $region52
      $region51: #{tpu_custom_call.1} parent=5 // pred_region
        %s411 = ssub.s32 %s21, 2
        // Predicated region
        $region53: #{tpu_custom_call.1} parent=51 // pred_check
          %p412 = pneg %p97
        $region54: #{tpu_custom_call.1} parent=51 // pred_check_branch
          %414 = sbr.rel (%p412) target = $region56
        $region55: #{tpu_custom_call.1} parent=51 // pred_region
          %s415 = sand.u32 %s82, 1
          %s416 = scalar_lea.sflag [#allocation4], %s415
          %s417 = sand.u32 %s82, 1
          %s418 = smul.addr %s417, 8
          %s419 = scalar_lea.vmem [#allocation7], %s418
          %420 = dma.done %s416, 128
        $region56: #{tpu_custom_call.1} parent=51 // pred_fallthru
          _
        // Predicated region
        $region57: #{tpu_custom_call.1} parent=51 // pred_check
          %p421 = pneg %p123
        $region58: #{tpu_custom_call.1} parent=51 // pred_check_branch
          %423 = sbr.rel (%p421) target = $region60
        $region59: #{tpu_custom_call.1} parent=51 // pred_region
          %s424 = sand.u32 %s27, 1
          %s425 = scalar_lea.sflag [#allocation9], %s424
          %s426 = sand.u32 %s108, 1
          %s427 = smul.addr %s426, 8
          %s428 = scalar_lea.vmem [#allocation8], %s427
          %429 = dma.done %s425, 128
        $region60: #{tpu_custom_call.1} parent=51 // pred_fallthru
          _
        // Predicated region
        $region61: #{tpu_custom_call.1} parent=51 // pred_check
          %p430 = pneg %p149
        $region62: #{tpu_custom_call.1} parent=51 // pred_check_branch
          %432 = sbr.rel (%p430) target = $region64
        $region63: #{tpu_custom_call.1} parent=51 // pred_region
          %s433 = sand.u32 %s27, 1
          %s434 = scalar_lea.sflag [#allocation9], %s433
          %s435 = sand.u32 %s134, 1
          %s436 = smul.addr %s435, 8
          %s437 = scalar_lea.vmem [#allocation10], %s436
          %438 = dma.done %s434, 128
        $region64: #{tpu_custom_call.1} parent=51 // pred_fallthru
          _
      $region52: #{tpu_custom_call.1} parent=5 // pred_fallthru
        _
    $region6: #{tpu_custom_call.1} parent=1 // loop_footer
      %s25 = sadd.s32 1, %s21
    $region7: #{tpu_custom_call.1} parent=1 // loop_footer_branch
      %20 = sbr.rel target = $region3
    $region8: #{tpu_custom_call.1} parent=1 // loop_exit
      _
    %439 = vsyncpa [#allocation3], 1
    %s440 = scalar_lea.sflag [#allocation3], 1
    %441 = vsyncpa %s440, 1
    %442 = vsyncpa [#allocation6], 1
    %443 = vsyncpa [#allocation4], 1
    %s444 = scalar_lea.sflag [#allocation4], 1
    %445 = vsyncpa %s444, 1
    %446 = vsyncpa [#allocation9], 1
    %s447 = scalar_lea.sflag [#allocation9], 1
    %448 = vsyncpa %s447, 1

</llo_original>
